<compile_context>
chip_gen: v5e
topology: v5e:2x2
jax: 0.10.0
libtpu: 0.0.40
codegen_flags: <defaults>
</compile_context>

<pallas_src>
import jax
import jax.numpy as jnp
from jax.experimental import pallas as pl
from jax.experimental.pallas import tpu as pltpu


# ----------------------------------------------------------------------------
# Kernels
# ----------------------------------------------------------------------------
def _wlp_kernel_f32(w_ref, x_ref, o_ref):
    """f32 in / f32 out: accumulate directly into the resident output tile."""
    l = pl.program_id(1)
    contrib = w_ref[l] * x_ref[...]

    @pl.when(l == 0)
    def _():
        o_ref[...] = contrib

    @pl.when(l > 0)
    def _():
        o_ref[...] = o_ref[...] + contrib


def _wlp_kernel_acc(w_ref, x_ref, o_ref, acc_ref):
    """Narrow-dtype I/O: f32 accumulator with fused init / epilogue."""
    l = pl.program_id(1)
    last = pl.num_programs(1) - 1
    contrib = w_ref[l] * x_ref[...].astype(jnp.float32)

    @pl.when((l == 0) & (l != last))
    def _():
        acc_ref[...] = contrib                       # no separate zero-store

    @pl.when((l > 0) & (l != last))
    def _():
        acc_ref[...] = acc_ref[...] + contrib

    @pl.when((l == last) & (l > 0))
    def _():
        o_ref[...] = (acc_ref[...] + contrib).astype(o_ref.dtype)  # no acc re-read pass

    @pl.when((l == last) & (l == 0))                 # single-layer edge case
    def _():
        o_ref[...] = contrib.astype(o_ref.dtype)


# ----------------------------------------------------------------------------
# Tiling helpers
# ----------------------------------------------------------------------------
def _vmem_budgets():
    """(tile budget, scoped vmem limit), derived from physical VMEM.

    limit ~= 0.75 * physical, budget ~= 0.5 * limit.
    Falls back to conservative v7x-safe values (64 MiB physical) if the
    hardware query is unavailable.
    """
    try:
        phys = int(pltpu.get_tpu_info().vmem_capacity_bytes)
    except Exception:
        phys = 64 << 20  # v7x per-TC VMEM; safe lower bound everywhere
    limit = max(32 << 20, (phys * 3) // 4)
    budget = limit // 2
    return budget, limit


def _choose_lane(R, H):
    """Pick a lane-dense 2-D view (rows, LANE) of each layer's R*H elements."""
    if H % 128 == 0:
        return H, R                      # natural layout already lane-dense
    N = R * H
    for lane in (1024, 512, 384, 256, 128):
        if N % lane == 0:
            return lane, N // lane       # free contiguous reshape (elementwise op)
    # Fallback: keep (R, H); last dim == full array dim is legal but uses
    # masked partial stores when H % 128 != 0.
    return H, R


def _choose_row_tile(rows, lane, in_itemsize, out_itemsize, acc_bytes,
                     budget_bytes, granule):
    """Largest row tile (multiple of `granule`, or the full `rows`) whose
    working set (2x in bufs + 2x out bufs + optional f32 acc) fits the budget.
    The grid uses cdiv, so the tile does not need to divide `rows`."""
    per_row = lane * (2 * in_itemsize + 2 * out_itemsize + acc_bytes)
    cap = max(granule, (budget_bytes // max(per_row, 1)) // granule * granule)
    # Guarantee >= 2 row tiles when possible so the "parallel" row axis can
    # shard across v7x's two TensorCores (cost on 1-TC chips is negligible).
    if rows > granule:
        half = -(-rows // 2)
        half = -(-half // granule) * granule
        cap = min(cap, half)
    tr = min(cap, rows)
    if tr < rows and tr % granule != 0:
        tr = max(granule, (tr // granule) * granule)
    return tr


# ----------------------------------------------------------------------------
# Wrapper
# ----------------------------------------------------------------------------
def weighted_layer_pooling(all_hidden_states, layer_weights, layer_start=4):
    """all_hidden_states: (L_total, B, S, H); layer_weights: (L_total - layer_start,)."""
    Lt, B, S, H = all_hidden_states.shape
    L = Lt - layer_start
    assert layer_weights.shape == (L,)

    dtype = all_hidden_states.dtype
    itemsize = jnp.dtype(dtype).itemsize

    # Lane-dense, free contiguous per-layer view.
    lane, rows = _choose_lane(B * S, H)
    x = all_hidden_states.reshape(Lt, rows, lane)

    # Pre-normalize the tiny weight vector on the host: kernel needs no divide.
    w = layer_weights.astype(jnp.float32)
    w = w / jnp.sum(w)

    f32_io = dtype == jnp.float32
    acc_bytes = 0 if f32_io else 4
    granule = {4: 8, 2: 16, 1: 32}.get(itemsize, 8)   # sublane packing per dtype

    budget, vmem_limit = _vmem_budgets()
    tr = _choose_row_tile(rows, lane, itemsize, itemsize, acc_bytes, budget, granule)
    num_row_tiles = pl.cdiv(rows, tr)

    kernel = _wlp_kernel_f32 if f32_io else _wlp_kernel_acc
    scratch = [] if f32_io else [pltpu.VMEM((tr, lane), jnp.float32)]

    cost = pl.CostEstimate(
        flops=2 * L * rows * lane,
        bytes_accessed=(L * itemsize + itemsize) * rows * lane,
        transcendentals=0,
    )

    out = pl.pallas_call(
        kernel,
        out_shape=jax.ShapeDtypeStruct((rows, lane), dtype),
        grid_spec=pltpu.PrefetchScalarGridSpec(
            num_scalar_prefetch=0,
            grid=(num_row_tiles, L),   # rows parallel, layers = innermost reduction
            in_specs=[
                # Normalized layer weights, scalar-read from SMEM.
                pl.BlockSpec(memory_space=pltpu.MemorySpace.SMEM),
                # One (tr, lane) slab of layer (l + layer_start) per step; the
                # layer offset is folded into the index_map so the unsliced
                # tensor is streamed in place from HBM.
                pl.BlockSpec(
                    (pl.Squeezed(), tr, lane),
                    lambda r, l: (l + layer_start, r, 0),
                ),
            ],
            out_specs=pl.BlockSpec((tr, lane), lambda r, l: (r, 0)),
            scratch_shapes=scratch,
        ),
        compiler_params=pltpu.CompilerParams(
            dimension_semantics=("parallel", "arbitrary"),
            vmem_limit_bytes=vmem_limit,
        ),
        cost_estimate=cost,
    )(w, x)

    return out.reshape(B, S, H)


def reference(all_hidden_states, layer_weights, layer_start=4):
    x = all_hidden_states[layer_start:].astype(jnp.float32)
    w = layer_weights.astype(jnp.float32)[:, None, None, None]
    return (w * x).sum(axis=0) / layer_weights.sum()


if __name__ == "__main__":
    num_hidden_layers = 12
    layer_start = 4
    B, S, H = 2, 8, 32
    Lt = num_hidden_layers + 1  # embeddings + all hidden layers

    key = jax.random.PRNGKey(0)
    all_hidden_states = jax.random.normal(key, (Lt, B, S, H), dtype=jnp.float32)

    # Deterministic init, matching nn.Parameter(torch.tensor([1]*L, dtype=float)).
    layer_weights = jnp.ones((Lt - layer_start,), dtype=jnp.float32)

    # --- f32 path (accumulates directly into the resident output tile) ---
    out = weighted_layer_pooling(all_hidden_states, layer_weights, layer_start)
    out = jax.block_until_ready(out)
    ref = reference(all_hidden_states, layer_weights, layer_start)
    assert out.shape == (B, S, H)
    assert jnp.allclose(out, ref, atol=1e-5, rtol=1e-5), "f32 mismatch vs reference"

    # --- bf16 path (f32 accumulator scratch, fused init/epilogue) ---
    ahs_bf16 = all_hidden_states.astype(jnp.bfloat16)
    out_bf16 = weighted_layer_pooling(ahs_bf16, layer_weights, layer_start)
    out_bf16 = jax.block_until_ready(out_bf16)
    ref_bf16 = reference(ahs_bf16, layer_weights, layer_start)
    assert jnp.allclose(out_bf16.astype(jnp.float32), ref_bf16, atol=2e-2, rtol=2e-2), \
        "bf16 mismatch vs reference"

    print("KERNEL_OK")
</pallas_src>

<mosaic_0001>
module attributes {stable_mosaic.version = 11 : i64} {
  func.func @_wlp_kernel_f32(%arg0: i32, %arg1: i32, %arg2: memref<9xf32, #tpu.memory_space<smem>>, %arg3: memref<1x1x512xf32, #tpu.memory_space<vmem>>, %arg4: memref<1x512xf32, #tpu.memory_space<vmem>>) attributes {dimension_semantics = [#tpu.dimension_semantics<parallel>, #tpu.dimension_semantics<arbitrary>], iteration_bounds = array<i64: 1, 9>, scalar_prefetch = 0 : i64, scratch_operands = 0 : i64, tpu.core_type = #tpu.core_type<tc>, window_params = [{transform_indices = @transform_0, window_bounds = array<i64: 9>}, {transform_indices = @transform_1, window_bounds = array<i64: 1, 1, 512>}, {transform_indices = @transform_2, window_bounds = array<i64: 1, 512>}]} {
    %0 = arith.index_cast %arg1 : i32 to index
    %1 = memref.load %arg2[%0] : memref<9xf32, #tpu.memory_space<smem>>
    %c0 = arith.constant 0 : index
    %c0_0 = arith.constant 0 : index
    %c0_1 = arith.constant 0 : index
    %2 = vector.load %arg3[%c0, %c0_0, %c0_1] : memref<1x1x512xf32, #tpu.memory_space<vmem>>, vector<1x1x512xf32>
    %3 = vector.shape_cast %2 : vector<1x1x512xf32> to vector<1x512xf32>
    %4 = vector.broadcast %1 : f32 to vector<1x512xf32>
    %5 = arith.mulf %4, %3 : vector<1x512xf32>
    %c0_i32 = arith.constant 0 : i32
    %6 = arith.cmpi eq, %arg1, %c0_i32 : i32
    %7 = arith.extui %6 : i1 to i32
    %c0_i32_2 = arith.constant 0 : i32
    %8 = arith.cmpi ne, %7, %c0_i32_2 : i32
    scf.if %8 {
      %c0_5 = arith.constant 0 : index
      %c0_6 = arith.constant 0 : index
      %12 = vector.load %arg4[%c0_5, %c0_6] : memref<1x512xf32, #tpu.memory_space<vmem>>, vector<1x512xf32>
      tpu.vector_store %arg4[%c0_5, %c0_6], %5 {strides = array<i32>} : memref<1x512xf32, #tpu.memory_space<vmem>>, vector<1x512xf32>,
    } else {
    }
    %c0_i32_3 = arith.constant 0 : i32
    %9 = arith.cmpi sgt, %arg1, %c0_i32_3 : i32
    %10 = arith.extui %9 : i1 to i32
    %c0_i32_4 = arith.constant 0 : i32
    %11 = arith.cmpi ne, %10, %c0_i32_4 : i32
    scf.if %11 {
      %c0_5 = arith.constant 0 : index
      %c0_6 = arith.constant 0 : index
      %12 = vector.load %arg4[%c0_5, %c0_6] : memref<1x512xf32, #tpu.memory_space<vmem>>, vector<1x512xf32>
      %13 = arith.addf %12, %5 : vector<1x512xf32>
      %c0_7 = arith.constant 0 : index
      %c0_8 = arith.constant 0 : index
      %14 = vector.load %arg4[%c0_7, %c0_8] : memref<1x512xf32, #tpu.memory_space<vmem>>, vector<1x512xf32>
      tpu.vector_store %arg4[%c0_7, %c0_8], %13 {strides = array<i32>} : memref<1x512xf32, #tpu.memory_space<vmem>>, vector<1x512xf32>,
    } else {
    }
    return
  }
  func.func @transform_0(%arg0: i32, %arg1: i32) -> i32 {
    %c0_i32 = arith.constant 0 : i32
    %c0_i32_0 = arith.constant 0 : i32
    return %c0_i32 : i32
  }
  func.func @transform_1(%arg0: i32, %arg1: i32) -> (i32, i32, i32) {
    %c4_i32 = arith.constant 4 : i32
    %0 = arith.addi %arg1, %c4_i32 : i32
    %c0_i32 = arith.constant 0 : i32
    %c0_i32_0 = arith.constant 0 : i32
    return %0, %arg0, %c0_i32 : i32, i32, i32
  }
  func.func @transform_2(%arg0: i32, %arg1: i32) -> (i32, i32) {
    %c0_i32 = arith.constant 0 : i32
    %c0_i32_0 = arith.constant 0 : i32
    return %arg0, %c0_i32 : i32, i32
  }
}

</mosaic_0001>

<llo_original>
// kernel: tpu_custom_call.1
$region0: #{tpu_custom_call.1}
  #allocation0 [shape = 'u32[]', space=smem, size = 0x4, offset = 0x4, fixed_abs, tag = 'smem constant byte address 0x4 - core index']
  #allocation1 [shape = 'u32[72,128]{1,0:T(1,128)}', space=vmem, size = 0x9000, scoped, tag = 'internal scratch']
  %s0 = inlined_call_operand.hbm [shape: f32[9], index: 0, kind: input, shape index: {}]
  %s1 = inlined_call_operand.hbm [shape: f32[13,1,512], index: 1, kind: input, shape index: {}]
  %s2 = inlined_call_operand.hbm [shape: f32[1,512], index: 2, kind: output, shape index: {}]
  %s3 = sld [smem:[#allocation0]]
  $region57: #{tpu_custom_call.1} parent=0
    _
  %s5 = ssub.s32 1, %s3
  %s6 = scalar_select 0, %s5, %s3
  $region1: #{tpu_custom_call.1} parent=0
    #allocation2 [shape = 'u8[512]{0}', space=smem, size = 0x200, scoped, tag = 'input window, operand 0, single buffered']
    #allocation3 [shape = 's32[2]{0}', space=sflag, size = 0x8, scoped, tag = 'scoped memory for tpu_custom_call.1']
    #allocation4 [shape = 's32[2]{0}', space=sflag, size = 0x8, scoped, tag = 'scoped memory for tpu_custom_call.1']
    #allocation5 [shape = 's32[2]{0}', space=sflag, size = 0x8, scoped, tag = 'scoped memory for tpu_custom_call.1']
    #allocation6 [shape = 'u8[4096]{0}', space=vmem, size = 0x1000, scoped, tag = 'input window, operand 1']
    #allocation7 [shape = 'u8[2048]{0}', space=vmem, size = 0x800, scoped, tag = 'output window, operand 0, single buffered']
    %7 = vsyncpa [#allocation5], 0
    %8 = vsyncpa [#allocation3], 0
    %s9 = scalar_lea.sflag [#allocation3], 1
    %10 = vsyncpa %s9, 0
    %11 = vsyncpa [#allocation4], 0
    loop: start=0, step=1, limit=11
    $region2: #{tpu_custom_call.1} parent=1 // loop_pre_header
      _
    $region3: #{tpu_custom_call.1} parent=1 // loop_header
      %s13 = sphi 0, %s17
      %p14 = scmp.ge.s32.totalorder %s13, 11
      %s20 = sphi 0, %s32
      %s21 = sphi 0, %s28
      %s22 = sphi 0, %s20
      %s23 = sphi 0, %s21
      %s24 = sphi 0, %s22
      %s25 = sphi 0, %s23
      %s33 = sphi 0, %s33
      %s35 = sphi 0, %s33
      %s36 = sphi 0, %s35
      %s50 = sphi 0, %s36
      %s60 = sphi 0, %s62
      %s63 = sphi 0, %s60
      %s64 = sphi 0, %s63
      %s80 = sphi 0, %s64
      %s86 = sphi 0, %s88
      %s89 = sphi 0, %s86
      %s90 = sphi 0, %s89
      %s106 = sphi 0, %s90
    $region4: #{tpu_custom_call.1} parent=1 // loop_header_branch
      %16 = sbr.rel (%p14) target = $region8
    $region5: #{tpu_custom_call.1} parent=1 // loop_body
      %s18 = ssub.s32 %s13, 1
      %s19 = ssub.s32 %s13, 2
      %s26 = sadd.s32 1, %s21
      %p27 = scmp.ge.s32.totalorder %s26, 9
      %s28 = scalar_select %p27, 0, %s26
      %s29 = sadd.s32 1, %s20
      %s30 = scalar_select %p27, %s29, %s20
      %p31 = scmp.ge.s32.totalorder %s30, 1
      %s32 = scalar_select %p31, 0, %s30
      %s34 = sadd.s32 %s33, 1
      %p37 = scmp.eq.s32.totalorder %s13, 8
      %p38 = scmp.ne.s32.totalorder %s33, %s35
      %p39 = scmp.eq.s32.totalorder %s13, 0
      %p40 = por %p38, %p39
      %p41 = scmp.ne.s32.totalorder %s33, %s35
      %p42 = scmp.eq.s32.totalorder %s18, 8
      %p43 = por %p41, %p42
      %p44 = scmp.ne.s32.totalorder %s35, %s36
      %p45 = scmp.eq.s32.totalorder %s18, 0
      %p46 = por %p44, %p45
      %p47 = scmp.ne.s32.totalorder %s35, %s36
      %p48 = scmp.eq.s32.totalorder %s19, 8
      %p49 = por %p47, %p48
      %p51 = scmp.ne.s32.totalorder %s36, %s50
      %p52 = scmp.eq.s32.totalorder %s19, 0
      %p53 = por %p51, %p52
      %s54 = sadd.s32 %s21, 4
      %s55 = sadd.s32 %s28, 4
      %s56 = ssub.s32 %s54, %s55
      %s57 = ssub.s32 %s20, %s32
      %s58 = sor.u32 %s56, %s57
      %p59 = scmp.eq.s32.totalorder %s58, 0
      %s61 = sadd.s32 %s60, 1
      %s62 = scalar_select %p59, %s60, %s61
      %p65 = pneg %p59
      %p66 = scmp.eq.s32.totalorder %s13, 8
      %p67 = por %p65, %p66
      %p68 = scmp.ne.s32.totalorder %s60, %s63
      %p69 = scmp.eq.s32.totalorder %s13, 0
      %p70 = por %p68, %p69
      %p71 = scmp.ne.s32.totalorder %s60, %s63
      %p72 = scmp.eq.s32.totalorder %s18, 8
      %p73 = por %p71, %p72
      %p74 = scmp.ne.s32.totalorder %s63, %s64
      %p75 = scmp.eq.s32.totalorder %s18, 0
      %p76 = por %p74, %p75
      %p77 = scmp.ne.s32.totalorder %s63, %s64
      %p78 = scmp.eq.s32.totalorder %s19, 8
      %p79 = por %p77, %p78
      %p81 = scmp.ne.s32.totalorder %s64, %s80
      %p82 = scmp.eq.s32.totalorder %s19, 0
      %p83 = por %p81, %p82
      %s84 = ssub.s32 %s20, %s32
      %p85 = scmp.eq.s32.totalorder %s84, 0
      %s87 = sadd.s32 %s86, 1
      %s88 = scalar_select %p85, %s86, %s87
      %p91 = pneg %p85
      %p92 = scmp.eq.s32.totalorder %s13, 8
      %p93 = por %p91, %p92
      %p94 = scmp.ne.s32.totalorder %s86, %s89
      %p95 = scmp.eq.s32.totalorder %s13, 0
      %p96 = por %p94, %p95
      %p97 = scmp.ne.s32.totalorder %s86, %s89
      %p98 = scmp.eq.s32.totalorder %s18, 8
      %p99 = por %p97, %p98
      %p100 = scmp.ne.s32.totalorder %s89, %s90
      %p101 = scmp.eq.s32.totalorder %s18, 0
      %p102 = por %p100, %p101
      %p103 = scmp.ne.s32.totalorder %s89, %s90
      %p104 = scmp.eq.s32.totalorder %s19, 8
      %p105 = por %p103, %p104
      %p107 = scmp.ne.s32.totalorder %s90, %s106
      %p108 = scmp.eq.s32.totalorder %s19, 0
      %p109 = por %p107, %p108
      %p110 = scmp.le.s32.totalorder 1, %s13
      %p111 = scmp.lt.s32.totalorder %s13, 10
      %p112 = pnand %p110, %p111
      %p113 = pneg %p112
      // Predicated region
      $region9: #{tpu_custom_call.1} parent=5 // pred_check
        _
      $region10: #{tpu_custom_call.1} parent=5 // pred_check_branch
        %115 = sbr.rel (%p112) target = $region12
      $region11: #{tpu_custom_call.1} parent=5 // pred_region
        %s116 = ssub.s32 %s13, 1
        // Predicated region
        $region13: #{tpu_custom_call.1} parent=11 // pred_check
          %p117 = pneg %p46
        $region14: #{tpu_custom_call.1} parent=11 // pred_check_branch
          %119 = sbr.rel (%p117) target = $region16
        $region15: #{tpu_custom_call.1} parent=11 // pred_region
          %121 = vsyncadd [#allocation5], 0
          %s123 = sshll.u32 %s0, 4
          %s124 = int_to_ptr.hbm [resolvable:$true] %s123
          %126 = dma.hbm_to_smem %s124, 16, [#allocation2], [#allocation5]
        $region16: #{tpu_custom_call.1} parent=11 // pred_fallthru
          _
      $region12: #{tpu_custom_call.1} parent=5 // pred_fallthru
        _
      %p127 = scmp.lt.s32.totalorder %s13, 9
      // Predicated region
      $region17: #{tpu_custom_call.1} parent=5 // pred_check
        %p128 = pneg %p127
      $region18: #{tpu_custom_call.1} parent=5 // pred_check_branch
        %130 = sbr.rel (%p128) target = $region20
      $region19: #{tpu_custom_call.1} parent=5 // pred_region
        // Predicated region
        $region21: #{tpu_custom_call.1} parent=19 // pred_check
          %p131 = pneg %p70
        $region22: #{tpu_custom_call.1} parent=19 // pred_check_branch
          %133 = sbr.rel (%p131) target = $region24
        $region23: #{tpu_custom_call.1} parent=19 // pred_region
          %s134 = sand.u32 %s60, 1
          %s135 = scalar_lea.sflag [#allocation3], %s134
          %s136 = sand.u32 %s60, 1
          %s137 = smul.addr %s136, 4
          %s138 = scalar_lea.vmem [#allocation6], %s137
          %s139 = sadd.s32 %s21, 4
          %141 = vsyncadd %s135, 0
          %s142 = smul.addr %s20, 4
          %s143 = smul.addr %s139, 4
          %s144 = sadd.s32 %s142, %s143
          %s145 = scalar_lea.hbm %s1, %s144
          %s147 = sshll.u32 %s145, 4
          %s148 = int_to_ptr.hbm [resolvable:$true] %s147
          %s149 = sshll.u32 %s138, 4
          %s150 = int_to_ptr.vmem [resolvable:$true] %s149
          %152 = dma.hbm_to_vmem [thread:$0]  %s148, 64, %s150, %s135
        $region24: #{tpu_custom_call.1} parent=19 // pred_fallthru
          _
      $region20: #{tpu_custom_call.1} parent=5 // pred_fallthru
        _
      %p153 = scmp.le.s32.totalorder 1, %s13
      %p154 = scmp.lt.s32.totalorder %s13, 10
      %p155 = pnand %p153, %p154
      %p156 = pneg %p155
      // Predicated region
      $region25: #{tpu_custom_call.1} parent=5 // pred_check
        _
      $region26: #{tpu_custom_call.1} parent=5 // pred_check_branch
        %158 = sbr.rel (%p155) target = $region28
      $region27: #{tpu_custom_call.1} parent=5 // pred_region
        %s159 = ssub.s32 %s13, 1
        // Predicated region
        $region29: #{tpu_custom_call.1} parent=27 // pred_check
          %p160 = pneg %p46
        $region30: #{tpu_custom_call.1} parent=27 // pred_check_branch
          %162 = sbr.rel (%p160) target = $region32
        $region31: #{tpu_custom_call.1} parent=27 // pred_region
          %164 = dma.done [#allocation5], 16
        $region32: #{tpu_custom_call.1} parent=27 // pred_fallthru
          _
        %s165 = sand.u32 %s63, 1
        %s166 = scalar_lea.sflag [#allocation3], %s165
        %s167 = sand.u32 %s63, 1
        %s168 = smul.addr %s167, 4
        %s169 = scalar_lea.vmem [#allocation6], %s168
        // Predicated region
        $region33: #{tpu_custom_call.1} parent=27 // pred_check
          %p170 = pneg %p76
        $region34: #{tpu_custom_call.1} parent=27 // pred_check_branch
          %172 = sbr.rel (%p170) target = $region36
        $region35: #{tpu_custom_call.1} parent=27 // pred_region
          %174 = dma.done %s166, 64
        $region36: #{tpu_custom_call.1} parent=27 // pred_fallthru
          _
        %175 = sfence
        %p176 = pneg %p46
        %p177 = pneg %p43
        %s178 = sand.u32 %s63, 1
        %s179 = scalar_lea.sflag [#allocation3], %s178
        %s180 = sand.u32 %s63, 1
        %s181 = smul.addr %s180, 4
        %s182 = scalar_lea.vmem [#allocation6], %s181
        %p183 = pneg %p76
        %p184 = pneg %p73
        %p185 = pneg %p102
        %p186 = pneg %p99
        %s187 = sadd.s32 %s23, 4
        %s188 = sld [smem:[#allocation2 + %s23]]
        %v189 = vld [vmem:[%s169] sm:$0xf]
        %v190 = vstv %s188
        %v191 = vmul.f32 %v190, %v189
        %p192 = scmp.eq.s32.totalorder %s23, 0
        // Predicated region
        $region37: #{tpu_custom_call.1} parent=27 // pred_check
          %p193 = pneg %p192
        $region38: #{tpu_custom_call.1} parent=27 // pred_check_branch
          %195 = sbr.rel (%p193) target = $region40
        $region39: #{tpu_custom_call.1} parent=27 // pred_region
          %v196 = vlaneseq
          %vm197 = vcmp.ge.s32.totalorder %v196, 0
          %vm198 = vcmp.lt.s32.totalorder %v196, 512
          %vm199 = vmand %vm197, %vm198
          %200 = vst.msk [vmem:[#allocation7] sm:$0xf] %vm199, %v191
        $region40: #{tpu_custom_call.1} parent=27 // pred_fallthru
          _
        %p201 = scmp.gt.s32.totalorder %s23, 0
        // Predicated region
        $region41: #{tpu_custom_call.1} parent=27 // pred_check
          %p202 = pneg %p201
        $region42: #{tpu_custom_call.1} parent=27 // pred_check_branch
          %204 = sbr.rel (%p202) target = $region44
        $region43: #{tpu_custom_call.1} parent=27 // pred_region
          %v205 = vld [vmem:[#allocation7] sm:$0xf]
          %v206 = vadd.f32 %v205, %v191
          %v207 = vlaneseq
          %vm208 = vcmp.ge.s32.totalorder %v207, 0
          %vm209 = vcmp.lt.s32.totalorder %v207, 512
          %vm210 = vmand %vm208, %vm209
          %211 = vst.msk [vmem:[#allocation7] sm:$0xf] %vm210, %v206
        $region44: #{tpu_custom_call.1} parent=27 // pred_fallthru
          _
        // Predicated region
        $region45: #{tpu_custom_call.1} parent=27 // pred_check
          %p212 = pneg %p99
        $region46: #{tpu_custom_call.1} parent=27 // pred_check_branch
          %214 = sbr.rel (%p212) target = $region48
        $region47: #{tpu_custom_call.1} parent=27 // pred_region
          %216 = vsyncadd [#allocation4], 0
          %s217 = smul.addr %s22, 4
          %s218 = scalar_lea.hbm %s2, %s217
          %s220 = sshll.u32 [#allocation7], 4
          %s221 = int_to_ptr.vmem [resolvable:$true] %s220
          %s222 = sshll.u32 %s218, 4
          %s223 = int_to_ptr.hbm [resolvable:$true] %s222
          %225 = dma.vmem_to_hbm [thread:$0]  %s221, 64, %s223, [#allocation4]
        $region48: #{tpu_custom_call.1} parent=27 // pred_fallthru
          _
        // Predicated region
        $region49: #{tpu_custom_call.1} parent=27 // pred_check
          %p226 = pneg %p99
        $region50: #{tpu_custom_call.1} parent=27 // pred_check_branch
          %228 = sbr.rel (%p226) target = $region52
        $region51: #{tpu_custom_call.1} parent=27 // pred_region
          %230 = dma.done [#allocation4], 64
        $region52: #{tpu_custom_call.1} parent=27 // pred_fallthru
          _
      $region28: #{tpu_custom_call.1} parent=5 // pred_fallthru
        _
      %p231 = scmp.le.s32.totalorder 2, %s13
      // Predicated region
      $region53: #{tpu_custom_call.1} parent=5 // pred_check
        %p232 = pneg %p231
      $region54: #{tpu_custom_call.1} parent=5 // pred_check_branch
        %234 = sbr.rel (%p232) target = $region56
      $region55: #{tpu_custom_call.1} parent=5 // pred_region
        %s235 = ssub.s32 %s13, 2
      $region56: #{tpu_custom_call.1} parent=5 // pred_fallthru
        _
    $region6: #{tpu_custom_call.1} parent=1 // loop_footer
      %s17 = sadd.s32 1, %s13
    $region7: #{tpu_custom_call.1} parent=1 // loop_footer_branch
      %12 = sbr.rel target = $region3
    $region8: #{tpu_custom_call.1} parent=1 // loop_exit
      _
    %236 = vsyncpa [#allocation3], 1
    %s237 = scalar_lea.sflag [#allocation3], 1
    %238 = vsyncpa %s237, 1
    %239 = vsyncpa [#allocation4], 1
    %s240 = scalar_lea.sflag [#allocation4], 1
    %241 = vsyncpa %s240, 1
    %242 = vsyncpa [#allocation5], 1
    %s243 = scalar_lea.sflag [#allocation5], 1
    %244 = vsyncpa %s243, 1

</llo_original>
